<compile_context>
chip_gen: v6e
topology: v6e:2x2x1
jax: 0.10.0
libtpu: 0.0.40
codegen_flags: <defaults>
</compile_context>

<pallas_src>
import functools

import jax
import jax.numpy as jnp
from jax.experimental import pallas as pl
from jax.experimental.pallas import tpu as pltpu


_LANE = 128
_SUBLANE = 8


def _round_up(x, m):
    return ((x + m - 1) // m) * m


def _fused_mlp_kernel(n_layers, z_layer_idx, a_ref, *refs):
    """Fused (Linear -> ReLU) x n_layers; activation never leaves the chip.

    refs layout: w0, b0, w1, b1, ..., w_{L-1}, b_{L-1}, ahat_ref, z_ref
    """
    param_refs = refs[: 2 * n_layers]
    ahat_ref = refs[2 * n_layers]
    z_ref = refs[2 * n_layers + 1]

    x = a_ref[...]
    for l in range(n_layers):
        w = param_refs[2 * l][...]
        b = param_refs[2 * l + 1][...]          # (1, N) -> broadcasts over rows
        x = jnp.dot(x, w, preferred_element_type=jnp.float32) + b
        x = jnp.maximum(x, 0.0)
        if l == z_layer_idx:                    # trace-time branch
            z_ref[...] = x.astype(z_ref.dtype)
    ahat_ref[...] = x.astype(ahat_ref.dtype)


def sdne_forward(A, enc_params, dec_params):
    """Returns (A_hat, Z) exactly like the PyTorch module's forward()."""
    layers = list(enc_params) + list(dec_params)
    n_layers = len(layers)
    z_layer_idx = len(enc_params) - 1

    M, D_in = A.shape

    # Lane-pad every feature dim to a multiple of 128 (lane-dense stores /
    # full MXU tiles).  dims[l] = in_features of layer l, dims[-1] = final out.
    dims = [D_in] + [w.shape[1] for (w, _) in layers]
    dims_pad = [_round_up(d, _LANE) for d in dims]
    D_in_pad = dims_pad[0]
    Dz = dims[z_layer_idx + 1]
    Dz_pad = dims_pad[z_layer_idx + 1]

    # Full-height MXU row tiles; pad node count so every tile is full.
    tm = 256 if M >= 256 else _round_up(M, _SUBLANE)
    M_pad = _round_up(M, tm)

    A_p = jnp.pad(A, ((0, M_pad - M), (0, D_in_pad - D_in)))

    padded_params = []
    for l, (w, b) in enumerate(layers):
        din, dout = w.shape
        w_p = jnp.pad(w, ((0, dims_pad[l] - din), (0, dims_pad[l + 1] - dout)))
        b_p = jnp.pad(b, (0, dims_pad[l + 1] - dout)).reshape(1, dims_pad[l + 1])
        padded_params.extend([w_p, b_p])

    grid = (M_pad // tm,)

    in_specs = [pl.BlockSpec((tm, D_in_pad), lambda i: (i, 0))]      # A row tile
    for l in range(n_layers):
        din_p, dout_p = dims_pad[l], dims_pad[l + 1]
        in_specs.append(pl.BlockSpec((din_p, dout_p), lambda i: (0, 0)))  # W (whole)
        in_specs.append(pl.BlockSpec((1, dout_p), lambda i: (0, 0)))      # b (whole)

    out_specs = [
        pl.BlockSpec((tm, D_in_pad), lambda i: (i, 0)),   # A_hat row tile
        pl.BlockSpec((tm, Dz_pad), lambda i: (i, 0)),     # Z row tile
    ]
    out_shape = [
        jax.ShapeDtypeStruct((M_pad, D_in_pad), A.dtype),
        jax.ShapeDtypeStruct((M_pad, Dz_pad), A.dtype),
    ]

    kernel = functools.partial(_fused_mlp_kernel, n_layers, z_layer_idx)

    a_hat_p, z_p = pl.pallas_call(
        kernel,
        out_shape=out_shape,
        grid_spec=pltpu.PrefetchScalarGridSpec(
            num_scalar_prefetch=0,
            grid=grid,
            in_specs=in_specs,
            out_specs=out_specs,
        ),
        compiler_params=pltpu.CompilerParams(
            dimension_semantics=("parallel",),
        ),
    )(A_p, *padded_params)

    # Strip row / lane padding.
    return a_hat_p[:M, :D_in], z_p[:M, :Dz]


sdne_forward_jit = jax.jit(sdne_forward)


def init_sdne_params(key, input_dim, hidden_layers):
    """nn.Linear default init: U(-1/sqrt(fan_in), 1/sqrt(fan_in)).

    Weights are stored pre-transposed as [in_features, out_features] so the
    kernel computes out = relu(x @ W + b).
    Returns (encoder_params, decoder_params), each a list of (W, b).
    """
    enc_dims, dec_dims = [], []
    d = input_dim
    for h in hidden_layers:
        enc_dims.append((d, h))
        d = h
    for h in reversed(hidden_layers[:-1]):
        dec_dims.append((d, h))
        d = h
    dec_dims.append((d, input_dim))

    def make(key, dims):
        params = []
        for (fan_in, fan_out) in dims:
            key, kw, kb = jax.random.split(key, 3)
            bound = 1.0 / jnp.sqrt(jnp.float32(fan_in))
            w = jax.random.uniform(kw, (fan_in, fan_out), jnp.float32, -bound, bound)
            b = jax.random.uniform(kb, (fan_out,), jnp.float32, -bound, bound)
            params.append((w, b))
        return key, params

    key, enc = make(key, enc_dims)
    key, dec = make(key, dec_dims)
    return enc, dec


def _reference_forward(A, enc_params, dec_params):
    z = A
    for w, b in enc_params:
        z = jnp.maximum(z @ w + b, 0.0)
    Z = z
    a_hat = Z
    for w, b in dec_params:
        a_hat = jnp.maximum(a_hat @ w + b, 0.0)
    return a_hat, Z


if __name__ == "__main__":
    input_dim = 128
    hidden_layers = [64, 32]

    key = jax.random.PRNGKey(0)
    key, k_adj = jax.random.split(key)
    enc_params, dec_params = init_sdne_params(key, input_dim, hidden_layers)

    # Case 1: aligned node count (adjacency matrix is [num_nodes, input_dim]).
    num_nodes = 128
    A = (jax.random.uniform(k_adj, (num_nodes, input_dim)) > 0.7).astype(jnp.float32)

    A_hat, Z = sdne_forward_jit(A, enc_params, dec_params)
    A_hat = jax.block_until_ready(A_hat)
    Z = jax.block_until_ready(Z)

    assert A_hat.shape == (num_nodes, input_dim), A_hat.shape
    assert Z.shape == (num_nodes, hidden_layers[-1]), Z.shape

    A_hat_ref, Z_ref = _reference_forward(A, enc_params, dec_params)
    assert jnp.allclose(A_hat, A_hat_ref, atol=1e-5, rtol=1e-5)
    assert jnp.allclose(Z, Z_ref, atol=1e-5, rtol=1e-5)

    # Case 2: non-aligned node count exercises the row-padding path.
    num_nodes2 = 100
    key, k_adj2 = jax.random.split(key)
    A2 = (jax.random.uniform(k_adj2, (num_nodes2, input_dim)) > 0.7).astype(jnp.float32)
    A_hat2, Z2 = sdne_forward_jit(A2, enc_params, dec_params)
    A_hat2 = jax.block_until_ready(A_hat2)
    Z2 = jax.block_until_ready(Z2)
    A_hat2_ref, Z2_ref = _reference_forward(A2, enc_params, dec_params)
    assert A_hat2.shape == (num_nodes2, input_dim)
    assert Z2.shape == (num_nodes2, hidden_layers[-1])
    assert jnp.allclose(A_hat2, A_hat2_ref, atol=1e-5, rtol=1e-5)
    assert jnp.allclose(Z2, Z2_ref, atol=1e-5, rtol=1e-5)

    print("KERNEL_OK")
</pallas_src>

<mosaic_0001>
module attributes {stable_mosaic.version = 11 : i64} {
  func.func @_fused_mlp_kernel(%arg0: i32, %arg1: memref<128x128xf32, #tpu.memory_space<vmem>>, %arg2: memref<128x128xf32, #tpu.memory_space<vmem>>, %arg3: memref<1x128xf32, #tpu.memory_space<vmem>>, %arg4: memref<128x128xf32, #tpu.memory_space<vmem>>, %arg5: memref<1x128xf32, #tpu.memory_space<vmem>>, %arg6: memref<128x128xf32, #tpu.memory_space<vmem>>, %arg7: memref<1x128xf32, #tpu.memory_space<vmem>>, %arg8: memref<128x128xf32, #tpu.memory_space<vmem>>, %arg9: memref<1x128xf32, #tpu.memory_space<vmem>>, %arg10: memref<128x128xf32, #tpu.memory_space<vmem>>, %arg11: memref<128x128xf32, #tpu.memory_space<vmem>>) attributes {dimension_semantics = [#tpu.dimension_semantics<parallel>], iteration_bounds = array<i64: 1>, scalar_prefetch = 0 : i64, scratch_operands = 0 : i64, tpu.core_type = #tpu.core_type<tc>, window_params = [{transform_indices = @transform_0, window_bounds = array<i64: 128, 128>}, {pipeline_mode = #tpu.pipeline_mode<synchronous>, transform_indices = @transform_1, window_bounds = array<i64: 128, 128>}, {pipeline_mode = #tpu.pipeline_mode<synchronous>, transform_indices = @transform_2, window_bounds = array<i64: 1, 128>}, {pipeline_mode = #tpu.pipeline_mode<synchronous>, transform_indices = @transform_3, window_bounds = array<i64: 128, 128>}, {pipeline_mode = #tpu.pipeline_mode<synchronous>, transform_indices = @transform_4, window_bounds = array<i64: 1, 128>}, {pipeline_mode = #tpu.pipeline_mode<synchronous>, transform_indices = @transform_5, window_bounds = array<i64: 128, 128>}, {pipeline_mode = #tpu.pipeline_mode<synchronous>, transform_indices = @transform_6, window_bounds = array<i64: 1, 128>}, {pipeline_mode = #tpu.pipeline_mode<synchronous>, transform_indices = @transform_7, window_bounds = array<i64: 128, 128>}, {pipeline_mode = #tpu.pipeline_mode<synchronous>, transform_indices = @transform_8, window_bounds = array<i64: 1, 128>}, {transform_indices = @transform_9, window_bounds = array<i64: 128, 128>}, {transform_indices = @transform_10, window_bounds = array<i64: 128, 128>}]} {
    %c0 = arith.constant 0 : index
    %c0_0 = arith.constant 0 : index
    %0 = vector.load %arg1[%c0, %c0_0] : memref<128x128xf32, #tpu.memory_space<vmem>>, vector<128x128xf32>
    %c0_1 = arith.constant 0 : index
    %c0_2 = arith.constant 0 : index
    %1 = vector.load %arg2[%c0_1, %c0_2] : memref<128x128xf32, #tpu.memory_space<vmem>>, vector<128x128xf32>
    %c0_3 = arith.constant 0 : index
    %c0_4 = arith.constant 0 : index
    %2 = vector.load %arg3[%c0_3, %c0_4] : memref<1x128xf32, #tpu.memory_space<vmem>>, vector<1x128xf32>
    %cst = arith.constant dense<0.000000e+00> : vector<128x128xf32>
    %3 = tpu.matmul %0, %1, %cst {dimension_numbers = #tpu.dot_dimension_numbers<[1], [0], [0], [1], [0, 0, 1, 1], [], []>} : vector<128x128xf32>, vector<128x128xf32>, vector<128x128xf32> -> vector<128x128xf32>
    %4 = vector.broadcast %2 : vector<1x128xf32> to vector<128x128xf32>
    %5 = arith.addf %3, %4 : vector<128x128xf32>
    %cst_5 = arith.constant 0.000000e+00 : f32
    %6 = vector.broadcast %cst_5 : f32 to vector<128x128xf32>
    %7 = arith.maximumf %5, %6 : vector<128x128xf32>
    %c0_6 = arith.constant 0 : index
    %c0_7 = arith.constant 0 : index
    %8 = vector.load %arg4[%c0_6, %c0_7] : memref<128x128xf32, #tpu.memory_space<vmem>>, vector<128x128xf32>
    %c0_8 = arith.constant 0 : index
    %c0_9 = arith.constant 0 : index
    %9 = vector.load %arg5[%c0_8, %c0_9] : memref<1x128xf32, #tpu.memory_space<vmem>>, vector<1x128xf32>
    %cst_10 = arith.constant dense<0.000000e+00> : vector<128x128xf32>
    %10 = tpu.matmul %7, %8, %cst_10 {dimension_numbers = #tpu.dot_dimension_numbers<[1], [0], [0], [1], [0, 0, 1, 1], [], []>} : vector<128x128xf32>, vector<128x128xf32>, vector<128x128xf32> -> vector<128x128xf32>
    %11 = vector.broadcast %9 : vector<1x128xf32> to vector<128x128xf32>
    %12 = arith.addf %10, %11 : vector<128x128xf32>
    %cst_11 = arith.constant 0.000000e+00 : f32
    %13 = vector.broadcast %cst_11 : f32 to vector<128x128xf32>
    %14 = arith.maximumf %12, %13 : vector<128x128xf32>
    %c0_12 = arith.constant 0 : index
    %c0_13 = arith.constant 0 : index
    %15 = vector.load %arg11[%c0_12, %c0_13] : memref<128x128xf32, #tpu.memory_space<vmem>>, vector<128x128xf32>
    tpu.vector_store %arg11[%c0_12, %c0_13], %14 {strides = array<i32>} : memref<128x128xf32, #tpu.memory_space<vmem>>, vector<128x128xf32>,
    %c0_14 = arith.constant 0 : index
    %c0_15 = arith.constant 0 : index
    %16 = vector.load %arg6[%c0_14, %c0_15] : memref<128x128xf32, #tpu.memory_space<vmem>>, vector<128x128xf32>
    %c0_16 = arith.constant 0 : index
    %c0_17 = arith.constant 0 : index
    %17 = vector.load %arg7[%c0_16, %c0_17] : memref<1x128xf32, #tpu.memory_space<vmem>>, vector<1x128xf32>
    %cst_18 = arith.constant dense<0.000000e+00> : vector<128x128xf32>
    %18 = tpu.matmul %14, %16, %cst_18 {dimension_numbers = #tpu.dot_dimension_numbers<[1], [0], [0], [1], [0, 0, 1, 1], [], []>} : vector<128x128xf32>, vector<128x128xf32>, vector<128x128xf32> -> vector<128x128xf32>
    %19 = vector.broadcast %17 : vector<1x128xf32> to vector<128x128xf32>
    %20 = arith.addf %18, %19 : vector<128x128xf32>
    %cst_19 = arith.constant 0.000000e+00 : f32
    %21 = vector.broadcast %cst_19 : f32 to vector<128x128xf32>
    %22 = arith.maximumf %20, %21 : vector<128x128xf32>
    %c0_20 = arith.constant 0 : index
    %c0_21 = arith.constant 0 : index
    %23 = vector.load %arg8[%c0_20, %c0_21] : memref<128x128xf32, #tpu.memory_space<vmem>>, vector<128x128xf32>
    %c0_22 = arith.constant 0 : index
    %c0_23 = arith.constant 0 : index
    %24 = vector.load %arg9[%c0_22, %c0_23] : memref<1x128xf32, #tpu.memory_space<vmem>>, vector<1x128xf32>
    %cst_24 = arith.constant dense<0.000000e+00> : vector<128x128xf32>
    %25 = tpu.matmul %22, %23, %cst_24 {dimension_numbers = #tpu.dot_dimension_numbers<[1], [0], [0], [1], [0, 0, 1, 1], [], []>} : vector<128x128xf32>, vector<128x128xf32>, vector<128x128xf32> -> vector<128x128xf32>
    %26 = vector.broadcast %24 : vector<1x128xf32> to vector<128x128xf32>
    %27 = arith.addf %25, %26 : vector<128x128xf32>
    %cst_25 = arith.constant 0.000000e+00 : f32
    %28 = vector.broadcast %cst_25 : f32 to vector<128x128xf32>
    %29 = arith.maximumf %27, %28 : vector<128x128xf32>
    %c0_26 = arith.constant 0 : index
    %c0_27 = arith.constant 0 : index
    %30 = vector.load %arg10[%c0_26, %c0_27] : memref<128x128xf32, #tpu.memory_space<vmem>>, vector<128x128xf32>
    tpu.vector_store %arg10[%c0_26, %c0_27], %29 {strides = array<i32>} : memref<128x128xf32, #tpu.memory_space<vmem>>, vector<128x128xf32>,
    return
  }
  func.func @transform_0(%arg0: i32) -> (i32, i32) {
    %c0_i32 = arith.constant 0 : i32
    %c0_i32_0 = arith.constant 0 : i32
    return %arg0, %c0_i32 : i32, i32
  }
  func.func @transform_1(%arg0: i32) -> (i32, i32) {
    %c0_i32 = arith.constant 0 : i32
    %c0_i32_0 = arith.constant 0 : i32
    %c0_i32_1 = arith.constant 0 : i32
    return %c0_i32, %c0_i32_0 : i32, i32
  }
  func.func @transform_2(%arg0: i32) -> (i32, i32) {
    %c0_i32 = arith.constant 0 : i32
    %c0_i32_0 = arith.constant 0 : i32
    %c0_i32_1 = arith.constant 0 : i32
    return %c0_i32, %c0_i32_0 : i32, i32
  }
  func.func @transform_3(%arg0: i32) -> (i32, i32) {
    %c0_i32 = arith.constant 0 : i32
    %c0_i32_0 = arith.constant 0 : i32
    %c0_i32_1 = arith.constant 0 : i32
    return %c0_i32, %c0_i32_0 : i32, i32
  }
  func.func @transform_4(%arg0: i32) -> (i32, i32) {
    %c0_i32 = arith.constant 0 : i32
    %c0_i32_0 = arith.constant 0 : i32
    %c0_i32_1 = arith.constant 0 : i32
    return %c0_i32, %c0_i32_0 : i32, i32
  }
  func.func @transform_5(%arg0: i32) -> (i32, i32) {
    %c0_i32 = arith.constant 0 : i32
    %c0_i32_0 = arith.constant 0 : i32
    %c0_i32_1 = arith.constant 0 : i32
    return %c0_i32, %c0_i32_0 : i32, i32
  }
  func.func @transform_6(%arg0: i32) -> (i32, i32) {
    %c0_i32 = arith.constant 0 : i32
    %c0_i32_0 = arith.constant 0 : i32
    %c0_i32_1 = arith.constant 0 : i32
    return %c0_i32, %c0_i32_0 : i32, i32
  }
  func.func @transform_7(%arg0: i32) -> (i32, i32) {
    %c0_i32 = arith.constant 0 : i32
    %c0_i32_0 = arith.constant 0 : i32
    %c0_i32_1 = arith.constant 0 : i32
    return %c0_i32, %c0_i32_0 : i32, i32
  }
  func.func @transform_8(%arg0: i32) -> (i32, i32) {
    %c0_i32 = arith.constant 0 : i32
    %c0_i32_0 = arith.constant 0 : i32
    %c0_i32_1 = arith.constant 0 : i32
    return %c0_i32, %c0_i32_0 : i32, i32
  }
  func.func @transform_9(%arg0: i32) -> (i32, i32) {
    %c0_i32 = arith.constant 0 : i32
    %c0_i32_0 = arith.constant 0 : i32
    return %arg0, %c0_i32 : i32, i32
  }
  func.func @transform_10(%arg0: i32) -> (i32, i32) {
    %c0_i32 = arith.constant 0 : i32
    %c0_i32_0 = arith.constant 0 : i32
    return %arg0, %c0_i32 : i32, i32
  }
}

</mosaic_0001>

<llo_original>
// kernel: sdne_forward.1
$region0: #{sdne_forward.1}
  #allocation0 [shape = 'u32[]', space=smem, size = 0x4, offset = 0x4, fixed_abs, tag = 'smem constant byte address 0x4 - core index']
  #allocation1 [shape = 'u32[144,128]{1,0:T(1,128)}', space=vmem, size = 0x12000, scoped, tag = 'internal scratch']
  %s0 = inlined_call_operand.vmem [shape: f32[128,128], index: 0, kind: input, shape index: {}]
  %s1 = inlined_call_operand.vmem [shape: f32[128,128], index: 1, kind: input, shape index: {}]
  %s2 = inlined_call_operand.vmem [shape: f32[1,128], index: 2, kind: input, shape index: {}]
  %s3 = inlined_call_operand.vmem [shape: f32[128,128], index: 3, kind: input, shape index: {}]
  %s4 = inlined_call_operand.vmem [shape: f32[1,128], index: 4, kind: input, shape index: {}]
  %s5 = inlined_call_operand.vmem [shape: f32[128,128], index: 5, kind: input, shape index: {}]
  %s6 = inlined_call_operand.vmem [shape: f32[1,128], index: 6, kind: input, shape index: {}]
  %s7 = inlined_call_operand.vmem [shape: f32[128,128], index: 7, kind: input, shape index: {}]
  %s8 = inlined_call_operand.vmem [shape: f32[1,128], index: 8, kind: input, shape index: {}]
  %s9 = inlined_call_operand.hbm [shape: f32[128,128], index: 9, kind: output, shape index: {0}]
  %s10 = inlined_call_operand.vmem [shape: f32[128,128], index: 10, kind: output, shape index: {1}]
  %11 = xla_tuple %s9, %s10
  %s12 = sld [smem:[#allocation0]]
  $region54: #{sdne_forward.1} parent=0
    _
  %s14 = ssub.s32 1, %s12
  %s15 = scalar_select 0, %s14, %s12
  $region1: #{sdne_forward.1} parent=0
    #allocation2 [shape = 'u8[65536]{0}', space=vmem, size = 0x10000, scoped, tag = 'output window, operand 0, single buffered']
    #allocation3 [shape = 's32[1]{0}', space=sflag, size = 0x4, scoped, tag = 'scoped memory for sdne_forward.1']
    %16 = vsyncpa [#allocation3], 0
    // Predicated region
    $region2: #{sdne_forward.1} parent=1 // pred_check
      _
    $region3: #{sdne_forward.1} parent=1 // pred_check_branch
      %18 = sbr.rel (0) target = $region5
    $region4: #{sdne_forward.1} parent=1 // pred_region
      _
    $region5: #{sdne_forward.1} parent=1 // pred_fallthru
      _
    // Predicated region
    $region6: #{sdne_forward.1} parent=1 // pred_check
      _
    $region7: #{sdne_forward.1} parent=1 // pred_check_branch
      %20 = sbr.rel (0) target = $region9
    $region8: #{sdne_forward.1} parent=1 // pred_region
      _
    $region9: #{sdne_forward.1} parent=1 // pred_fallthru
      _
    // Predicated region
    $region10: #{sdne_forward.1} parent=1 // pred_check
      _
    $region11: #{sdne_forward.1} parent=1 // pred_check_branch
      %22 = sbr.rel (0) target = $region13
    $region12: #{sdne_forward.1} parent=1 // pred_region
      _
    $region13: #{sdne_forward.1} parent=1 // pred_fallthru
      _
    // Predicated region
    $region14: #{sdne_forward.1} parent=1 // pred_check
      _
    $region15: #{sdne_forward.1} parent=1 // pred_check_branch
      %24 = sbr.rel (0) target = $region17
    $region16: #{sdne_forward.1} parent=1 // pred_region
      _
    $region17: #{sdne_forward.1} parent=1 // pred_fallthru
      _
    // Predicated region
    $region18: #{sdne_forward.1} parent=1 // pred_check
      _
    $region19: #{sdne_forward.1} parent=1 // pred_check_branch
      %26 = sbr.rel (0) target = $region21
    $region20: #{sdne_forward.1} parent=1 // pred_region
      _
    $region21: #{sdne_forward.1} parent=1 // pred_fallthru
      _
    // Predicated region
    $region22: #{sdne_forward.1} parent=1 // pred_check
      _
    $region23: #{sdne_forward.1} parent=1 // pred_check_branch
      %28 = sbr.rel (0) target = $region25
    $region24: #{sdne_forward.1} parent=1 // pred_region
      _
    $region25: #{sdne_forward.1} parent=1 // pred_fallthru
      _
    // Predicated region
    $region26: #{sdne_forward.1} parent=1 // pred_check
      _
    $region27: #{sdne_forward.1} parent=1 // pred_check_branch
      %30 = sbr.rel (0) target = $region29
    $region28: #{sdne_forward.1} parent=1 // pred_region
      _
    $region29: #{sdne_forward.1} parent=1 // pred_fallthru
      _
    // Predicated region
    $region30: #{sdne_forward.1} parent=1 // pred_check
      _
    $region31: #{sdne_forward.1} parent=1 // pred_check_branch
      %32 = sbr.rel (0) target = $region33
    $region32: #{sdne_forward.1} parent=1 // pred_region
      _
    $region33: #{sdne_forward.1} parent=1 // pred_fallthru
      _
    // Predicated region
    $region34: #{sdne_forward.1} parent=1 // pred_check
      _
    $region35: #{sdne_forward.1} parent=1 // pred_check_branch
      %34 = sbr.rel (0) target = $region37
    $region36: #{sdne_forward.1} parent=1 // pred_region
      _
    $region37: #{sdne_forward.1} parent=1 // pred_fallthru
      _
    %v35 = vld [vmem:[%s0] sm:$0xff]
    %v36 = vld [vmem:[%s0 + $0x8] sm:$0xff]
    %v37 = vld [vmem:[%s0 + $0x10] sm:$0xff]
    %v38 = vld [vmem:[%s0 + $0x18] sm:$0xff]
    %v39 = vld [vmem:[%s0 + $0x20] sm:$0xff]
    %v40 = vld [vmem:[%s0 + $0x28] sm:$0xff]
    %v41 = vld [vmem:[%s0 + $0x30] sm:$0xff]
    %v42 = vld [vmem:[%s0 + $0x38] sm:$0xff]
    %v43 = vld [vmem:[%s0 + $0x40] sm:$0xff]
    %v44 = vld [vmem:[%s0 + $0x48] sm:$0xff]
    %v45 = vld [vmem:[%s0 + $0x50] sm:$0xff]
    %v46 = vld [vmem:[%s0 + $0x58] sm:$0xff]
    %v47 = vld [vmem:[%s0 + $0x60] sm:$0xff]
    %v48 = vld [vmem:[%s0 + $0x68] sm:$0xff]
    %v49 = vld [vmem:[%s0 + $0x70] sm:$0xff]
    %v50 = vld [vmem:[%s0 + $0x78] sm:$0xff]
    %v51 = vld [vmem:[%s1] sm:$0xff]
    %v52 = vld [vmem:[%s1 + $0x8] sm:$0xff]
    %v53 = vld [vmem:[%s1 + $0x10] sm:$0xff]
    %v54 = vld [vmem:[%s1 + $0x18] sm:$0xff]
    %v55 = vld [vmem:[%s1 + $0x20] sm:$0xff]
    %v56 = vld [vmem:[%s1 + $0x28] sm:$0xff]
    %v57 = vld [vmem:[%s1 + $0x30] sm:$0xff]
    %v58 = vld [vmem:[%s1 + $0x38] sm:$0xff]
    %v59 = vld [vmem:[%s1 + $0x40] sm:$0xff]
    %v60 = vld [vmem:[%s1 + $0x48] sm:$0xff]
    %v61 = vld [vmem:[%s1 + $0x50] sm:$0xff]
    %v62 = vld [vmem:[%s1 + $0x58] sm:$0xff]
    %v63 = vld [vmem:[%s1 + $0x60] sm:$0xff]
    %v64 = vld [vmem:[%s1 + $0x68] sm:$0xff]
    %v65 = vld [vmem:[%s1 + $0x70] sm:$0xff]
    %v66 = vld [vmem:[%s1 + $0x78] sm:$0xff]
    %v67 = vld [vmem:[%s2] sm:$0x1]
    %v69 = vlaneseq
    %v70 = vshrl.u32 %v69, 7
    %v71 = vsub.s32 0, %v70
    %v72 = vrot.slane %v67, %v71
    %74 = vmatprep.subr.mxu0 0.0
    %75 = vmatpush1.msra.mxu0 %v66
    %76 = vmatprep.subr.mxu0 0.0
    %77 = vmatpush1.msra.mxu0 %v65
    %78 = vmatprep.subr.mxu0 0.0
    %79 = vmatpush1.msra.mxu0 %v64
    %80 = vmatprep.subr.mxu0 0.0
    %81 = vmatpush1.msra.mxu0 %v63
    %82 = vmatprep.subr.mxu0 0.0
    %83 = vmatpush1.msra.mxu0 %v62
    %84 = vmatprep.subr.mxu0 0.0
    %85 = vmatpush1.msra.mxu0 %v61
    %86 = vmatprep.subr.mxu0 0.0
    %87 = vmatpush1.msra.mxu0 %v60
    %88 = vmatprep.subr.mxu0 0.0
    %89 = vmatpush1.msra.mxu0 %v59
    %90 = vmatprep.subr.mxu0 0.0
    %91 = vmatpush1.msra.mxu0 %v58
    %92 = vmatprep.subr.mxu0 0.0
    %93 = vmatpush1.msra.mxu0 %v57
    %94 = vmatprep.subr.mxu0 0.0
    %95 = vmatpush1.msra.mxu0 %v56
    %96 = vmatprep.subr.mxu0 0.0
    %97 = vmatpush1.msra.mxu0 %v55
    %98 = vmatprep.subr.mxu0 0.0
    %99 = vmatpush1.msra.mxu0 %v54
    %100 = vmatprep.subr.mxu0 0.0
    %101 = vmatpush1.msra.mxu0 %v53
    %102 = vmatprep.subr.mxu0 0.0
    %103 = vmatpush1.msra.mxu0 %v52
    %104 = vmatprep.subr.mxu0 0.0
    %105 = vmatpush1.msra.mxu0 %v51
    %106 = vmatprep.subr.mxu0 0.0
    %107 = vmatpush2.msra.mxu0 0.0
    %108 = vmatprep.subr.mxu0 0.0
    %109 = vmatpush2.msra.mxu0 0.0
    %110 = vmatprep.subr.mxu0 0.0
    %111 = vmatpush2.msra.mxu0 0.0
    %112 = vmatprep.subr.mxu0 0.0
    %113 = vmatpush2.msra.mxu0 0.0
    %114 = vmatprep.subr.mxu0 0.0
    %115 = vmatpush2.msra.mxu0 0.0
    %116 = vmatprep.subr.mxu0 0.0
    %117 = vmatpush2.msra.mxu0 0.0
    %118 = vmatprep.subr.mxu0 0.0
    %119 = vmatpush2.msra.mxu0 0.0
    %120 = vmatprep.subr.mxu0 0.0
    %121 = vmatpush2.msra.mxu0 0.0
    %122 = vmatprep.subr.mxu0 0.0
    %123 = vmatpush2.msra.mxu0 0.0
    %124 = vmatprep.subr.mxu0 0.0
    %125 = vmatpush2.msra.mxu0 0.0
    %126 = vmatprep.subr.mxu0 0.0
    %127 = vmatpush2.msra.mxu0 0.0
    %128 = vmatprep.subr.mxu0 0.0
    %129 = vmatpush2.msra.mxu0 0.0
    %130 = vmatprep.subr.mxu0 0.0
    %131 = vmatpush2.msra.mxu0 0.0
    %132 = vmatprep.subr.mxu0 0.0
    %133 = vmatpush2.msra.mxu0 0.0
    %134 = vmatprep.subr.mxu0 0.0
    %135 = vmatpush2.msra.mxu0 0.0
    %136 = vmatprep.subr.mxu0 0.0
    %137 = vmatpush2.msra.mxu0 0.0
    %138 = vmatprep.mubr.f32.mxu0 0.0
    %139 = vmatmul.mubr.f32.gmra.mxu0 %v35
    %v140 = vpop.f32.mrf.mxu0
    %v141 = vadd.f32 %v72, %v140
    %v142 = vpop.f32.mrf.mxu0
    %143 = vmatprep.mubr.f32.mxu0 0.0
    %144 = vmatmul.mubr.f32.gmra.mxu0 %v36
    %v145 = vpop.f32.mrf.mxu0
    %v146 = vadd.f32 %v72, %v145
    %v147 = vpop.f32.mrf.mxu0
    %148 = vmatprep.mubr.f32.mxu0 0.0
    %149 = vmatmul.mubr.f32.gmra.mxu0 %v37
    %v150 = vpop.f32.mrf.mxu0
    %v151 = vadd.f32 %v72, %v150
    %v152 = vpop.f32.mrf.mxu0
    %153 = vmatprep.mubr.f32.mxu0 0.0
    %154 = vmatmul.mubr.f32.gmra.mxu0 %v38
    %v155 = vpop.f32.mrf.mxu0
    %v156 = vadd.f32 %v72, %v155
    %v157 = vpop.f32.mrf.mxu0
    %158 = vmatprep.mubr.f32.mxu0 0.0
    %159 = vmatmul.mubr.f32.gmra.mxu0 %v39
    %v160 = vpop.f32.mrf.mxu0
    %v161 = vadd.f32 %v72, %v160
    %v162 = vpop.f32.mrf.mxu0
    %163 = vmatprep.mubr.f32.mxu0 0.0
    %164 = vmatmul.mubr.f32.gmra.mxu0 %v40
    %v165 = vpop.f32.mrf.mxu0
    %v166 = vadd.f32 %v72, %v165
    %v167 = vpop.f32.mrf.mxu0
    %168 = vmatprep.mubr.f32.mxu0 0.0
    %169 = vmatmul.mubr.f32.gmra.mxu0 %v41
    %v170 = vpop.f32.mrf.mxu0
    %v171 = vadd.f32 %v72, %v170
    %v172 = vpop.f32.mrf.mxu0
    %173 = vmatprep.mubr.f32.mxu0 0.0
    %174 = vmatmul.mubr.f32.gmra.mxu0 %v42
    %v175 = vpop.f32.mrf.mxu0
    %v176 = vadd.f32 %v72, %v175
    %v177 = vpop.f32.mrf.mxu0
    %178 = vmatprep.mubr.f32.mxu0 0.0
    %179 = vmatmul.mubr.f32.gmra.mxu0 %v43
    %v180 = vpop.f32.mrf.mxu0
    %v181 = vadd.f32 %v72, %v180
    %v182 = vpop.f32.mrf.mxu0
    %183 = vmatprep.mubr.f32.mxu0 0.0
    %184 = vmatmul.mubr.f32.gmra.mxu0 %v44
    %v185 = vpop.f32.mrf.mxu0
    %v186 = vadd.f32 %v72, %v185
    %v187 = vpop.f32.mrf.mxu0
    %188 = vmatprep.mubr.f32.mxu0 0.0
    %189 = vmatmul.mubr.f32.gmra.mxu0 %v45
    %v190 = vpop.f32.mrf.mxu0
    %v191 = vadd.f32 %v72, %v190
    %v192 = vpop.f32.mrf.mxu0
    %193 = vmatprep.mubr.f32.mxu0 0.0
    %194 = vmatmul.mubr.f32.gmra.mxu0 %v46
    %v195 = vpop.f32.mrf.mxu0
    %v196 = vadd.f32 %v72, %v195
    %v197 = vpop.f32.mrf.mxu0
    %198 = vmatprep.mubr.f32.mxu0 0.0
    %199 = vmatmul.mubr.f32.gmra.mxu0 %v47
    %v200 = vpop.f32.mrf.mxu0
    %v201 = vadd.f32 %v72, %v200
    %v202 = vpop.f32.mrf.mxu0
    %203 = vmatprep.mubr.f32.mxu0 0.0
    %204 = vmatmul.mubr.f32.gmra.mxu0 %v48
    %v205 = vpop.f32.mrf.mxu0
    %v206 = vadd.f32 %v72, %v205
    %v207 = vpop.f32.mrf.mxu0
    %208 = vmatprep.mubr.f32.mxu0 0.0
    %209 = vmatmul.mubr.f32.gmra.mxu0 %v49
    %v210 = vpop.f32.mrf.mxu0
    %v211 = vadd.f32 %v72, %v210
    %v212 = vpop.f32.mrf.mxu0
    %213 = vmatprep.mubr.f32.mxu0 0.0
    %214 = vmatmul.mubr.f32.gmra.mxu0 %v50
    %v215 = vpop.f32.mrf.mxu0
    %v216 = vadd.f32 %v72, %v215
    %v217 = vpop.f32.mrf.mxu0
    %218 = vdwg.mxu0
    %v219 = vmax.f32 %v141, 0.0
    %v220 = vmax.f32 %v146, 0.0
    %v221 = vmax.f32 %v151, 0.0
    %v222 = vmax.f32 %v156, 0.0
    %v223 = vmax.f32 %v161, 0.0
    %v224 = vmax.f32 %v166, 0.0
    %v225 = vmax.f32 %v171, 0.0
    %v226 = vmax.f32 %v176, 0.0
    %v227 = vmax.f32 %v181, 0.0
    %v228 = vmax.f32 %v186, 0.0
    %v229 = vmax.f32 %v191, 0.0
    %v230 = vmax.f32 %v196, 0.0
    %v231 = vmax.f32 %v201, 0.0
    %v232 = vmax.f32 %v206, 0.0
    %v233 = vmax.f32 %v211, 0.0
    %v234 = vmax.f32 %v216, 0.0
    %v235 = vld [vmem:[%s3] sm:$0xff]
    %v236 = vld [vmem:[%s3 + $0x8] sm:$0xff]
    %v237 = vld [vmem:[%s3 + $0x10] sm:$0xff]
    %v238 = vld [vmem:[%s3 + $0x18] sm:$0xff]
    %v239 = vld [vmem:[%s3 + $0x20] sm:$0xff]
    %v240 = vld [vmem:[%s3 + $0x28] sm:$0xff]
    %v241 = vld [vmem:[%s3 + $0x30] sm:$0xff]
    %v242 = vld [vmem:[%s3 + $0x38] sm:$0xff]
    %v243 = vld [vmem:[%s3 + $0x40] sm:$0xff]
    %v244 = vld [vmem:[%s3 + $0x48] sm:$0xff]
    %v245 = vld [vmem:[%s3 + $0x50] sm:$0xff]
    %v246 = vld [vmem:[%s3 + $0x58] sm:$0xff]
    %v247 = vld [vmem:[%s3 + $0x60] sm:$0xff]
    %v248 = vld [vmem:[%s3 + $0x68] sm:$0xff]
    %v249 = vld [vmem:[%s3 + $0x70] sm:$0xff]
    %v250 = vld [vmem:[%s3 + $0x78] sm:$0xff]
    %v251 = vld [vmem:[%s4] sm:$0x1]
    %v253 = vlaneseq
    %v254 = vshrl.u32 %v253, 7
    %v255 = vsub.s32 0, %v254
    %v256 = vrot.slane %v251, %v255
    %258 = vmatprep.subr.mxu0 0.0
    %259 = vmatpush1.msra.mxu0 %v250
    %260 = vmatprep.subr.mxu0 0.0
    %261 = vmatpush1.msra.mxu0 %v249
    %262 = vmatprep.subr.mxu0 0.0
    %263 = vmatpush1.msra.mxu0 %v248
    %264 = vmatprep.subr.mxu0 0.0
    %265 = vmatpush1.msra.mxu0 %v247
    %266 = vmatprep.subr.mxu0 0.0
    %267 = vmatpush1.msra.mxu0 %v246
    %268 = vmatprep.subr.mxu0 0.0
    %269 = vmatpush1.msra.mxu0 %v245
    %270 = vmatprep.subr.mxu0 0.0
    %271 = vmatpush1.msra.mxu0 %v244
    %272 = vmatprep.subr.mxu0 0.0
    %273 = vmatpush1.msra.mxu0 %v243
    %274 = vmatprep.subr.mxu0 0.0
    %275 = vmatpush1.msra.mxu0 %v242
    %276 = vmatprep.subr.mxu0 0.0
    %277 = vmatpush1.msra.mxu0 %v241
    %278 = vmatprep.subr.mxu0 0.0
    %279 = vmatpush1.msra.mxu0 %v240
    %280 = vmatprep.subr.mxu0 0.0
    %281 = vmatpush1.msra.mxu0 %v239
    %282 = vmatprep.subr.mxu0 0.0
    %283 = vmatpush1.msra.mxu0 %v238
    %284 = vmatprep.subr.mxu0 0.0
    %285 = vmatpush1.msra.mxu0 %v237
    %286 = vmatprep.subr.mxu0 0.0
    %287 = vmatpush1.msra.mxu0 %v236
    %288 = vmatprep.subr.mxu0 0.0
    %289 = vmatpush1.msra.mxu0 %v235
    %290 = vmatprep.subr.mxu0 0.0
    %291 = vmatpush2.msra.mxu0 0.0
    %292 = vmatprep.subr.mxu0 0.0
    %293 = vmatpush2.msra.mxu0 0.0
    %294 = vmatprep.subr.mxu0 0.0
    %295 = vmatpush2.msra.mxu0 0.0
    %296 = vmatprep.subr.mxu0 0.0
    %297 = vmatpush2.msra.mxu0 0.0
    %298 = vmatprep.subr.mxu0 0.0
    %299 = vmatpush2.msra.mxu0 0.0
    %300 = vmatprep.subr.mxu0 0.0
    %301 = vmatpush2.msra.mxu0 0.0
    %302 = vmatprep.subr.mxu0 0.0
    %303 = vmatpush2.msra.mxu0 0.0
    %304 = vmatprep.subr.mxu0 0.0
    %305 = vmatpush2.msra.mxu0 0.0
    %306 = vmatprep.subr.mxu0 0.0
    %307 = vmatpush2.msra.mxu0 0.0
    %308 = vmatprep.subr.mxu0 0.0
    %309 = vmatpush2.msra.mxu0 0.0
    %310 = vmatprep.subr.mxu0 0.0
    %311 = vmatpush2.msra.mxu0 0.0
    %312 = vmatprep.subr.mxu0 0.0
    %313 = vmatpush2.msra.mxu0 0.0
    %314 = vmatprep.subr.mxu0 0.0
    %315 = vmatpush2.msra.mxu0 0.0
    %316 = vmatprep.subr.mxu0 0.0
    %317 = vmatpush2.msra.mxu0 0.0
    %318 = vmatprep.subr.mxu0 0.0
    %319 = vmatpush2.msra.mxu0 0.0
    %320 = vmatprep.subr.mxu0 0.0
    %321 = vmatpush2.msra.mxu0 0.0
    %322 = vmatprep.mubr.f32.mxu0 0.0
    %323 = vmatmul.mubr.f32.gmra.mxu0 %v219
    %v324 = vpop.f32.mrf.mxu0
    %v325 = vadd.f32 %v256, %v324
    %v326 = vpop.f32.mrf.mxu0
    %327 = vmatprep.mubr.f32.mxu0 0.0
    %328 = vmatmul.mubr.f32.gmra.mxu0 %v220
    %v329 = vpop.f32.mrf.mxu0
    %v330 = vadd.f32 %v256, %v329
    %v331 = vpop.f32.mrf.mxu0
    %332 = vmatprep.mubr.f32.mxu0 0.0
    %333 = vmatmul.mubr.f32.gmra.mxu0 %v221
    %v334 = vpop.f32.mrf.mxu0
    %v335 = vadd.f32 %v256, %v334
    %v336 = vpop.f32.mrf.mxu0
    %337 = vmatprep.mubr.f32.mxu0 0.0
    %338 = vmatmul.mubr.f32.gmra.mxu0 %v222
    %v339 = vpop.f32.mrf.mxu0
    %v340 = vadd.f32 %v256, %v339
    %v341 = vpop.f32.mrf.mxu0
    %342 = vmatprep.mubr.f32.mxu0 0.0
    %343 = vmatmul.mubr.f32.gmra.mxu0 %v223
    %v344 = vpop.f32.mrf.mxu0
    %v345 = vadd.f32 %v256, %v344
    %v346 = vpop.f32.mrf.mxu0
    %347 = vmatprep.mubr.f32.mxu0 0.0
    %348 = vmatmul.mubr.f32.gmra.mxu0 %v224
    %v349 = vpop.f32.mrf.mxu0
    %v350 = vadd.f32 %v256, %v349
    %v351 = vpop.f32.mrf.mxu0
    %352 = vmatprep.mubr.f32.mxu0 0.0
    %353 = vmatmul.mubr.f32.gmra.mxu0 %v225
    %v354 = vpop.f32.mrf.mxu0
    %v355 = vadd.f32 %v256, %v354
    %v356 = vpop.f32.mrf.mxu0
    %357 = vmatprep.mubr.f32.mxu0 0.0
    %358 = vmatmul.mubr.f32.gmra.mxu0 %v226
    %v359 = vpop.f32.mrf.mxu0
    %v360 = vadd.f32 %v256, %v359
    %v361 = vpop.f32.mrf.mxu0
    %362 = vmatprep.mubr.f32.mxu0 0.0
    %363 = vmatmul.mubr.f32.gmra.mxu0 %v227
    %v364 = vpop.f32.mrf.mxu0
    %v365 = vadd.f32 %v256, %v364
    %v366 = vpop.f32.mrf.mxu0
    %367 = vmatprep.mubr.f32.mxu0 0.0
    %368 = vmatmul.mubr.f32.gmra.mxu0 %v228
    %v369 = vpop.f32.mrf.mxu0
    %v370 = vadd.f32 %v256, %v369
    %v371 = vpop.f32.mrf.mxu0
    %372 = vmatprep.mubr.f32.mxu0 0.0
    %373 = vmatmul.mubr.f32.gmra.mxu0 %v229
    %v374 = vpop.f32.mrf.mxu0
    %v375 = vadd.f32 %v256, %v374
    %v376 = vpop.f32.mrf.mxu0
    %377 = vmatprep.mubr.f32.mxu0 0.0
    %378 = vmatmul.mubr.f32.gmra.mxu0 %v230
    %v379 = vpop.f32.mrf.mxu0
    %v380 = vadd.f32 %v256, %v379
    %v381 = vpop.f32.mrf.mxu0
    %382 = vmatprep.mubr.f32.mxu0 0.0
    %383 = vmatmul.mubr.f32.gmra.mxu0 %v231
    %v384 = vpop.f32.mrf.mxu0
    %v385 = vadd.f32 %v256, %v384
    %v386 = vpop.f32.mrf.mxu0
    %387 = vmatprep.mubr.f32.mxu0 0.0
    %388 = vmatmul.mubr.f32.gmra.mxu0 %v232
    %v389 = vpop.f32.mrf.mxu0
    %v390 = vadd.f32 %v256, %v389
    %v391 = vpop.f32.mrf.mxu0
    %392 = vmatprep.mubr.f32.mxu0 0.0
    %393 = vmatmul.mubr.f32.gmra.mxu0 %v233
    %v394 = vpop.f32.mrf.mxu0
    %v395 = vadd.f32 %v256, %v394
    %v396 = vpop.f32.mrf.mxu0
    %397 = vmatprep.mubr.f32.mxu0 0.0
    %398 = vmatmul.mubr.f32.gmra.mxu0 %v234
    %v399 = vpop.f32.mrf.mxu0
    %v400 = vadd.f32 %v256, %v399
    %v401 = vpop.f32.mrf.mxu0
    %402 = vdwg.mxu0
    %v403 = vmax.f32 %v325, 0.0
    %v404 = vmax.f32 %v330, 0.0
    %v405 = vmax.f32 %v335, 0.0
    %v406 = vmax.f32 %v340, 0.0
    %v407 = vmax.f32 %v345, 0.0
    %v408 = vmax.f32 %v350, 0.0
    %v409 = vmax.f32 %v355, 0.0
    %v410 = vmax.f32 %v360, 0.0
    %v411 = vmax.f32 %v365, 0.0
    %v412 = vmax.f32 %v370, 0.0
    %v413 = vmax.f32 %v375, 0.0
    %v414 = vmax.f32 %v380, 0.0
    %v415 = vmax.f32 %v385, 0.0
    %v416 = vmax.f32 %v390, 0.0
    %v417 = vmax.f32 %v395, 0.0
    %v418 = vmax.f32 %v400, 0.0
    %419 = vst [vmem:[%s10] sm:$0xff] %v403
    %420 = vst [vmem:[%s10 + $0x8] sm:$0xff] %v404
    %421 = vst [vmem:[%s10 + $0x10] sm:$0xff] %v405
    %422 = vst [vmem:[%s10 + $0x18] sm:$0xff] %v406
    %423 = vst [vmem:[%s10 + $0x20] sm:$0xff] %v407
    %424 = vst [vmem:[%s10 + $0x28] sm:$0xff] %v408
    %425 = vst [vmem:[%s10 + $0x30] sm:$0xff] %v409
    %426 = vst [vmem:[%s10 + $0x38] sm:$0xff] %v410
    %427 = vst [vmem:[%s10 + $0x40] sm:$0xff] %v411
    %428 = vst [vmem:[%s10 + $0x48] sm:$0xff] %v412
    %429 = vst [vmem:[%s10 + $0x50] sm:$0xff] %v413
    %430 = vst [vmem:[%s10 + $0x58] sm:$0xff] %v414
    %431 = vst [vmem:[%s10 + $0x60] sm:$0xff] %v415
    %432 = vst [vmem:[%s10 + $0x68] sm:$0xff] %v416
    %433 = vst [vmem:[%s10 + $0x70] sm:$0xff] %v417
    %434 = vst [vmem:[%s10 + $0x78] sm:$0xff] %v418
    %v435 = vld [vmem:[%s5] sm:$0xff]
    %v436 = vld [vmem:[%s5 + $0x8] sm:$0xff]
    %v437 = vld [vmem:[%s5 + $0x10] sm:$0xff]
    %v438 = vld [vmem:[%s5 + $0x18] sm:$0xff]
    %v439 = vld [vmem:[%s5 + $0x20] sm:$0xff]
    %v440 = vld [vmem:[%s5 + $0x28] sm:$0xff]
    %v441 = vld [vmem:[%s5 + $0x30] sm:$0xff]
    %v442 = vld [vmem:[%s5 + $0x38] sm:$0xff]
    %v443 = vld [vmem:[%s5 + $0x40] sm:$0xff]
    %v444 = vld [vmem:[%s5 + $0x48] sm:$0xff]
    %v445 = vld [vmem:[%s5 + $0x50] sm:$0xff]
    %v446 = vld [vmem:[%s5 + $0x58] sm:$0xff]
    %v447 = vld [vmem:[%s5 + $0x60] sm:$0xff]
    %v448 = vld [vmem:[%s5 + $0x68] sm:$0xff]
    %v449 = vld [vmem:[%s5 + $0x70] sm:$0xff]
    %v450 = vld [vmem:[%s5 + $0x78] sm:$0xff]
    %v451 = vld [vmem:[%s6] sm:$0x1]
    %v453 = vlaneseq
    %v454 = vshrl.u32 %v453, 7
    %v455 = vsub.s32 0, %v454
    %v456 = vrot.slane %v451, %v455
    %458 = vmatprep.subr.mxu0 0.0
    %459 = vmatpush1.msra.mxu0 %v450
    %460 = vmatprep.subr.mxu0 0.0
    %461 = vmatpush1.msra.mxu0 %v449
    %462 = vmatprep.subr.mxu0 0.0
    %463 = vmatpush1.msra.mxu0 %v448
    %464 = vmatprep.subr.mxu0 0.0
    %465 = vmatpush1.msra.mxu0 %v447
    %466 = vmatprep.subr.mxu0 0.0
    %467 = vmatpush1.msra.mxu0 %v446
    %468 = vmatprep.subr.mxu0 0.0
    %469 = vmatpush1.msra.mxu0 %v445
    %470 = vmatprep.subr.mxu0 0.0
    %471 = vmatpush1.msra.mxu0 %v444
    %472 = vmatprep.subr.mxu0 0.0
    %473 = vmatpush1.msra.mxu0 %v443
    %474 = vmatprep.subr.mxu0 0.0
    %475 = vmatpush1.msra.mxu0 %v442
    %476 = vmatprep.subr.mxu0 0.0
    %477 = vmatpush1.msra.mxu0 %v441
    %478 = vmatprep.subr.mxu0 0.0
    %479 = vmatpush1.msra.mxu0 %v440
    %480 = vmatprep.subr.mxu0 0.0
    %481 = vmatpush1.msra.mxu0 %v439
    %482 = vmatprep.subr.mxu0 0.0
    %483 = vmatpush1.msra.mxu0 %v438
    %484 = vmatprep.subr.mxu0 0.0
    %485 = vmatpush1.msra.mxu0 %v437
    %486 = vmatprep.subr.mxu0 0.0
    %487 = vmatpush1.msra.mxu0 %v436
    %488 = vmatprep.subr.mxu0 0.0
    %489 = vmatpush1.msra.mxu0 %v435
    %490 = vmatprep.subr.mxu0 0.0
    %491 = vmatpush2.msra.mxu0 0.0
    %492 = vmatprep.subr.mxu0 0.0
    %493 = vmatpush2.msra.mxu0 0.0
    %494 = vmatprep.subr.mxu0 0.0
    %495 = vmatpush2.msra.mxu0 0.0
    %496 = vmatprep.subr.mxu0 0.0
    %497 = vmatpush2.msra.mxu0 0.0
    %498 = vmatprep.subr.mxu0 0.0
    %499 = vmatpush2.msra.mxu0 0.0
    %500 = vmatprep.subr.mxu0 0.0
    %501 = vmatpush2.msra.mxu0 0.0
    %502 = vmatprep.subr.mxu0 0.0
    %503 = vmatpush2.msra.mxu0 0.0
    %504 = vmatprep.subr.mxu0 0.0
    %505 = vmatpush2.msra.mxu0 0.0
    %506 = vmatprep.subr.mxu0 0.0
    %507 = vmatpush2.msra.mxu0 0.0
    %508 = vmatprep.subr.mxu0 0.0
    %509 = vmatpush2.msra.mxu0 0.0
    %510 = vmatprep.subr.mxu0 0.0
    %511 = vmatpush2.msra.mxu0 0.0
    %512 = vmatprep.subr.mxu0 0.0
    %513 = vmatpush2.msra.mxu0 0.0
    %514 = vmatprep.subr.mxu0 0.0
    %515 = vmatpush2.msra.mxu0 0.0
    %516 = vmatprep.subr.mxu0 0.0
    %517 = vmatpush2.msra.mxu0 0.0
    %518 = vmatprep.subr.mxu0 0.0
    %519 = vmatpush2.msra.mxu0 0.0
    %520 = vmatprep.subr.mxu0 0.0
    %521 = vmatpush2.msra.mxu0 0.0
    %522 = vmatprep.mubr.f32.mxu0 0.0
    %523 = vmatmul.mubr.f32.gmra.mxu0 %v403
    %v524 = vpop.f32.mrf.mxu0
    %v525 = vadd.f32 %v456, %v524
    %v526 = vpop.f32.mrf.mxu0
    %527 = vmatprep.mubr.f32.mxu0 0.0
    %528 = vmatmul.mubr.f32.gmra.mxu0 %v404
    %v529 = vpop.f32.mrf.mxu0
    %v530 = vadd.f32 %v456, %v529
    %v531 = vpop.f32.mrf.mxu0
    %532 = vmatprep.mubr.f32.mxu0 0.0
    %533 = vmatmul.mubr.f32.gmra.mxu0 %v405
    %v534 = vpop.f32.mrf.mxu0
    %v535 = vadd.f32 %v456, %v534
    %v536 = vpop.f32.mrf.mxu0
    %537 = vmatprep.mubr.f32.mxu0 0.0
    %538 = vmatmul.mubr.f32.gmra.mxu0 %v406
    %v539 = vpop.f32.mrf.mxu0
    %v540 = vadd.f32 %v456, %v539
    %v541 = vpop.f32.mrf.mxu0
    %542 = vmatprep.mubr.f32.mxu0 0.0
    %543 = vmatmul.mubr.f32.gmra.mxu0 %v407
    %v544 = vpop.f32.mrf.mxu0
    %v545 = vadd.f32 %v456, %v544
    %v546 = vpop.f32.mrf.mxu0
    %547 = vmatprep.mubr.f32.mxu0 0.0
    %548 = vmatmul.mubr.f32.gmra.mxu0 %v408
    %v549 = vpop.f32.mrf.mxu0
    %v550 = vadd.f32 %v456, %v549
    %v551 = vpop.f32.mrf.mxu0
    %552 = vmatprep.mubr.f32.mxu0 0.0
    %553 = vmatmul.mubr.f32.gmra.mxu0 %v409
    %v554 = vpop.f32.mrf.mxu0
    %v555 = vadd.f32 %v456, %v554
    %v556 = vpop.f32.mrf.mxu0
    %557 = vmatprep.mubr.f32.mxu0 0.0
    %558 = vmatmul.mubr.f32.gmra.mxu0 %v410
    %v559 = vpop.f32.mrf.mxu0
    %v560 = vadd.f32 %v456, %v559
    %v561 = vpop.f32.mrf.mxu0
    %562 = vmatprep.mubr.f32.mxu0 0.0
    %563 = vmatmul.mubr.f32.gmra.mxu0 %v411
    %v564 = vpop.f32.mrf.mxu0
    %v565 = vadd.f32 %v456, %v564
    %v566 = vpop.f32.mrf.mxu0
    %567 = vmatprep.mubr.f32.mxu0 0.0
    %568 = vmatmul.mubr.f32.gmra.mxu0 %v412
    %v569 = vpop.f32.mrf.mxu0
    %v570 = vadd.f32 %v456, %v569
    %v571 = vpop.f32.mrf.mxu0
    %572 = vmatprep.mubr.f32.mxu0 0.0
    %573 = vmatmul.mubr.f32.gmra.mxu0 %v413
    %v574 = vpop.f32.mrf.mxu0
    %v575 = vadd.f32 %v456, %v574
    %v576 = vpop.f32.mrf.mxu0
    %577 = vmatprep.mubr.f32.mxu0 0.0
    %578 = vmatmul.mubr.f32.gmra.mxu0 %v414
    %v579 = vpop.f32.mrf.mxu0
    %v580 = vadd.f32 %v456, %v579
    %v581 = vpop.f32.mrf.mxu0
    %582 = vmatprep.mubr.f32.mxu0 0.0
    %583 = vmatmul.mubr.f32.gmra.mxu0 %v415
    %v584 = vpop.f32.mrf.mxu0
    %v585 = vadd.f32 %v456, %v584
    %v586 = vpop.f32.mrf.mxu0
    %587 = vmatprep.mubr.f32.mxu0 0.0
    %588 = vmatmul.mubr.f32.gmra.mxu0 %v416
    %v589 = vpop.f32.mrf.mxu0
    %v590 = vadd.f32 %v456, %v589
    %v591 = vpop.f32.mrf.mxu0
    %592 = vmatprep.mubr.f32.mxu0 0.0
    %593 = vmatmul.mubr.f32.gmra.mxu0 %v417
    %v594 = vpop.f32.mrf.mxu0
    %v595 = vadd.f32 %v456, %v594
    %v596 = vpop.f32.mrf.mxu0
    %597 = vmatprep.mubr.f32.mxu0 0.0
    %598 = vmatmul.mubr.f32.gmra.mxu0 %v418
    %v599 = vpop.f32.mrf.mxu0
    %v600 = vadd.f32 %v456, %v599
    %v601 = vpop.f32.mrf.mxu0
    %602 = vdwg.mxu0
    %v603 = vmax.f32 %v525, 0.0
    %v604 = vmax.f32 %v530, 0.0
    %v605 = vmax.f32 %v535, 0.0
    %v606 = vmax.f32 %v540, 0.0
    %v607 = vmax.f32 %v545, 0.0
    %v608 = vmax.f32 %v550, 0.0
    %v609 = vmax.f32 %v555, 0.0
    %v610 = vmax.f32 %v560, 0.0
    %v611 = vmax.f32 %v565, 0.0
    %v612 = vmax.f32 %v570, 0.0
    %v613 = vmax.f32 %v575, 0.0
    %v614 = vmax.f32 %v580, 0.0
    %v615 = vmax.f32 %v585, 0.0
    %v616 = vmax.f32 %v590, 0.0
    %v617 = vmax.f32 %v595, 0.0
    %v618 = vmax.f32 %v600, 0.0
    %v619 = vld [vmem:[%s7] sm:$0xff]
    %v620 = vld [vmem:[%s7 + $0x8] sm:$0xff]
    %v621 = vld [vmem:[%s7 + $0x10] sm:$0xff]
    %v622 = vld [vmem:[%s7 + $0x18] sm:$0xff]
    %v623 = vld [vmem:[%s7 + $0x20] sm:$0xff]
    %v624 = vld [vmem:[%s7 + $0x28] sm:$0xff]
    %v625 = vld [vmem:[%s7 + $0x30] sm:$0xff]
    %v626 = vld [vmem:[%s7 + $0x38] sm:$0xff]
    %v627 = vld [vmem:[%s7 + $0x40] sm:$0xff]
    %v628 = vld [vmem:[%s7 + $0x48] sm:$0xff]
    %v629 = vld [vmem:[%s7 + $0x50] sm:$0xff]
    %v630 = vld [vmem:[%s7 + $0x58] sm:$0xff]
    %v631 = vld [vmem:[%s7 + $0x60] sm:$0xff]
    %v632 = vld [vmem:[%s7 + $0x68] sm:$0xff]
    %v633 = vld [vmem:[%s7 + $0x70] sm:$0xff]
    %v634 = vld [vmem:[%s7 + $0x78] sm:$0xff]
    %v635 = vld [vmem:[%s8] sm:$0x1]
    %v637 = vlaneseq
    %v638 = vshrl.u32 %v637, 7
    %v639 = vsub.s32 0, %v638
    %v640 = vrot.slane %v635, %v639
    %642 = vmatprep.subr.mxu0 0.0
    %643 = vmatpush1.msra.mxu0 %v634
    %644 = vmatprep.subr.mxu0 0.0
    %645 = vmatpush1.msra.mxu0 %v633
    %646 = vmatprep.subr.mxu0 0.0
    %647 = vmatpush1.msra.mxu0 %v632
    %648 = vmatprep.subr.mxu0 0.0
    %649 = vmatpush1.msra.mxu0 %v631
    %650 = vmatprep.subr.mxu0 0.0
    %651 = vmatpush1.msra.mxu0 %v630
    %652 = vmatprep.subr.mxu0 0.0
    %653 = vmatpush1.msra.mxu0 %v629
    %654 = vmatprep.subr.mxu0 0.0
    %655 = vmatpush1.msra.mxu0 %v628
    %656 = vmatprep.subr.mxu0 0.0
    %657 = vmatpush1.msra.mxu0 %v627
    %658 = vmatprep.subr.mxu0 0.0
    %659 = vmatpush1.msra.mxu0 %v626
    %660 = vmatprep.subr.mxu0 0.0
    %661 = vmatpush1.msra.mxu0 %v625
    %662 = vmatprep.subr.mxu0 0.0
    %663 = vmatpush1.msra.mxu0 %v624
    %664 = vmatprep.subr.mxu0 0.0
    %665 = vmatpush1.msra.mxu0 %v623
    %666 = vmatprep.subr.mxu0 0.0
    %667 = vmatpush1.msra.mxu0 %v622
    %668 = vmatprep.subr.mxu0 0.0
    %669 = vmatpush1.msra.mxu0 %v621
    %670 = vmatprep.subr.mxu0 0.0
    %671 = vmatpush1.msra.mxu0 %v620
    %672 = vmatprep.subr.mxu0 0.0
    %673 = vmatpush1.msra.mxu0 %v619
    %674 = vmatprep.subr.mxu0 0.0
    %675 = vmatpush2.msra.mxu0 0.0
    %676 = vmatprep.subr.mxu0 0.0
    %677 = vmatpush2.msra.mxu0 0.0
    %678 = vmatprep.subr.mxu0 0.0
    %679 = vmatpush2.msra.mxu0 0.0
    %680 = vmatprep.subr.mxu0 0.0
    %681 = vmatpush2.msra.mxu0 0.0
    %682 = vmatprep.subr.mxu0 0.0
    %683 = vmatpush2.msra.mxu0 0.0
    %684 = vmatprep.subr.mxu0 0.0
    %685 = vmatpush2.msra.mxu0 0.0
    %686 = vmatprep.subr.mxu0 0.0
    %687 = vmatpush2.msra.mxu0 0.0
    %688 = vmatprep.subr.mxu0 0.0
    %689 = vmatpush2.msra.mxu0 0.0
    %690 = vmatprep.subr.mxu0 0.0
    %691 = vmatpush2.msra.mxu0 0.0
    %692 = vmatprep.subr.mxu0 0.0
    %693 = vmatpush2.msra.mxu0 0.0
    %694 = vmatprep.subr.mxu0 0.0
    %695 = vmatpush2.msra.mxu0 0.0
    %696 = vmatprep.subr.mxu0 0.0
    %697 = vmatpush2.msra.mxu0 0.0
    %698 = vmatprep.subr.mxu0 0.0
    %699 = vmatpush2.msra.mxu0 0.0
    %700 = vmatprep.subr.mxu0 0.0
    %701 = vmatpush2.msra.mxu0 0.0
    %702 = vmatprep.subr.mxu0 0.0
    %703 = vmatpush2.msra.mxu0 0.0
    %704 = vmatprep.subr.mxu0 0.0
    %705 = vmatpush2.msra.mxu0 0.0
    %706 = vmatprep.mubr.f32.mxu0 0.0
    %707 = vmatmul.mubr.f32.gmra.mxu0 %v603
    %v708 = vpop.f32.mrf.mxu0
    %v709 = vadd.f32 %v640, %v708
    %v710 = vpop.f32.mrf.mxu0
    %711 = vmatprep.mubr.f32.mxu0 0.0
    %712 = vmatmul.mubr.f32.gmra.mxu0 %v604
    %v713 = vpop.f32.mrf.mxu0
    %v714 = vadd.f32 %v640, %v713
    %v715 = vpop.f32.mrf.mxu0
    %716 = vmatprep.mubr.f32.mxu0 0.0
    %717 = vmatmul.mubr.f32.gmra.mxu0 %v605
    %v718 = vpop.f32.mrf.mxu0
    %v719 = vadd.f32 %v640, %v718
    %v720 = vpop.f32.mrf.mxu0
    %721 = vmatprep.mubr.f32.mxu0 0.0
    %722 = vmatmul.mubr.f32.gmra.mxu0 %v606
    %v723 = vpop.f32.mrf.mxu0
    %v724 = vadd.f32 %v640, %v723
    %v725 = vpop.f32.mrf.mxu0
    %726 = vmatprep.mubr.f32.mxu0 0.0
    %727 = vmatmul.mubr.f32.gmra.mxu0 %v607
    %v728 = vpop.f32.mrf.mxu0
    %v729 = vadd.f32 %v640, %v728
    %v730 = vpop.f32.mrf.mxu0
    %731 = vmatprep.mubr.f32.mxu0 0.0
    %732 = vmatmul.mubr.f32.gmra.mxu0 %v608
    %v733 = vpop.f32.mrf.mxu0
    %v734 = vadd.f32 %v640, %v733
    %v735 = vpop.f32.mrf.mxu0
    %736 = vmatprep.mubr.f32.mxu0 0.0
    %737 = vmatmul.mubr.f32.gmra.mxu0 %v609
    %v738 = vpop.f32.mrf.mxu0
    %v739 = vadd.f32 %v640, %v738
    %v740 = vpop.f32.mrf.mxu0
    %741 = vmatprep.mubr.f32.mxu0 0.0
    %742 = vmatmul.mubr.f32.gmra.mxu0 %v610
    %v743 = vpop.f32.mrf.mxu0
    %v744 = vadd.f32 %v640, %v743
    %v745 = vpop.f32.mrf.mxu0
    %746 = vmatprep.mubr.f32.mxu0 0.0
    %747 = vmatmul.mubr.f32.gmra.mxu0 %v611
    %v748 = vpop.f32.mrf.mxu0
    %v749 = vadd.f32 %v640, %v748
    %v750 = vpop.f32.mrf.mxu0
    %751 = vmatprep.mubr.f32.mxu0 0.0
    %752 = vmatmul.mubr.f32.gmra.mxu0 %v612
    %v753 = vpop.f32.mrf.mxu0
    %v754 = vadd.f32 %v640, %v753
    %v755 = vpop.f32.mrf.mxu0
    %756 = vmatprep.mubr.f32.mxu0 0.0
    %757 = vmatmul.mubr.f32.gmra.mxu0 %v613
    %v758 = vpop.f32.mrf.mxu0
    %v759 = vadd.f32 %v640, %v758
    %v760 = vpop.f32.mrf.mxu0
    %761 = vmatprep.mubr.f32.mxu0 0.0
    %762 = vmatmul.mubr.f32.gmra.mxu0 %v614
    %v763 = vpop.f32.mrf.mxu0
    %v764 = vadd.f32 %v640, %v763
    %v765 = vpop.f32.mrf.mxu0
    %766 = vmatprep.mubr.f32.mxu0 0.0
    %767 = vmatmul.mubr.f32.gmra.mxu0 %v615
    %v768 = vpop.f32.mrf.mxu0
    %v769 = vadd.f32 %v640, %v768
    %v770 = vpop.f32.mrf.mxu0
    %771 = vmatprep.mubr.f32.mxu0 0.0
    %772 = vmatmul.mubr.f32.gmra.mxu0 %v616
    %v773 = vpop.f32.mrf.mxu0
    %v774 = vadd.f32 %v640, %v773
    %v775 = vpop.f32.mrf.mxu0
    %776 = vmatprep.mubr.f32.mxu0 0.0
    %777 = vmatmul.mubr.f32.gmra.mxu0 %v617
    %v778 = vpop.f32.mrf.mxu0
    %v779 = vadd.f32 %v640, %v778
    %v780 = vpop.f32.mrf.mxu0
    %781 = vmatprep.mubr.f32.mxu0 0.0
    %782 = vmatmul.mubr.f32.gmra.mxu0 %v618
    %v783 = vpop.f32.mrf.mxu0
    %v784 = vadd.f32 %v640, %v783
    %v785 = vpop.f32.mrf.mxu0
    %786 = vdwg.mxu0
    %v787 = vmax.f32 %v709, 0.0
    %v788 = vmax.f32 %v714, 0.0
    %v789 = vmax.f32 %v719, 0.0
    %v790 = vmax.f32 %v724, 0.0
    %v791 = vmax.f32 %v729, 0.0
    %v792 = vmax.f32 %v734, 0.0
    %v793 = vmax.f32 %v739, 0.0
    %v794 = vmax.f32 %v744, 0.0
    %v795 = vmax.f32 %v749, 0.0
    %v796 = vmax.f32 %v754, 0.0
    %v797 = vmax.f32 %v759, 0.0
    %v798 = vmax.f32 %v764, 0.0
    %v799 = vmax.f32 %v769, 0.0
    %v800 = vmax.f32 %v774, 0.0
    %v801 = vmax.f32 %v779, 0.0
    %v802 = vmax.f32 %v784, 0.0
    %803 = vst [vmem:[#allocation2] sm:$0xff] %v787
    %804 = vst [vmem:[#allocation2 + $0x8] sm:$0xff] %v788
    %805 = vst [vmem:[#allocation2 + $0x10] sm:$0xff] %v789
    %806 = vst [vmem:[#allocation2 + $0x18] sm:$0xff] %v790
    %807 = vst [vmem:[#allocation2 + $0x20] sm:$0xff] %v791
    %808 = vst [vmem:[#allocation2 + $0x28] sm:$0xff] %v792
    %809 = vst [vmem:[#allocation2 + $0x30] sm:$0xff] %v793
    %810 = vst [vmem:[#allocation2 + $0x38] sm:$0xff] %v794
    %811 = vst [vmem:[#allocation2 + $0x40] sm:$0xff] %v795
    %812 = vst [vmem:[#allocation2 + $0x48] sm:$0xff] %v796
    %813 = vst [vmem:[#allocation2 + $0x50] sm:$0xff] %v797
    %814 = vst [vmem:[#allocation2 + $0x58] sm:$0xff] %v798
    %815 = vst [vmem:[#allocation2 + $0x60] sm:$0xff] %v799
    %816 = vst [vmem:[#allocation2 + $0x68] sm:$0xff] %v800
    %817 = vst [vmem:[#allocation2 + $0x70] sm:$0xff] %v801
    %818 = vst [vmem:[#allocation2 + $0x78] sm:$0xff] %v802
    // Predicated region
    $region38: #{sdne_forward.1} parent=1 // pred_check
      _
    $region39: #{sdne_forward.1} parent=1 // pred_check_branch
      %820 = sbr.rel (0) target = $region41
    $region40: #{sdne_forward.1} parent=1 // pred_region
      %s822 = ssub.s32 2048, 2048
      %823 = vsyncadd [#allocation3], %s822
      %s824 = sshll.u32 [#allocation2], 4
      %s825 = int_to_ptr.vmem [resolvable:$true] %s824
      %830 = dma.vmem_to_hbm [thread:$0]  %s825, 2048, %s9, [#allocation3], 128, 128, 8
    $region41: #{sdne_forward.1} parent=1 // pred_fallthru
      _
    // Predicated region
    $region42: #{sdne_forward.1} parent=1 // pred_check
      _
    $region43: #{sdne_forward.1} parent=1 // pred_check_branch
      %832 = sbr.rel (0) target = $region45
    $region44: #{sdne_forward.1} parent=1 // pred_region
      _
    $region45: #{sdne_forward.1} parent=1 // pred_fallthru
      _
    // Predicated region
    $region46: #{sdne_forward.1} parent=1 // pred_check
      _
    $region47: #{sdne_forward.1} parent=1 // pred_check_branch
      %834 = sbr.rel (0) target = $region49
    $region48: #{sdne_forward.1} parent=1 // pred_region
      %835 = dma.done [#allocation3], 2048
    $region49: #{sdne_forward.1} parent=1 // pred_fallthru
      _
    // Predicated region
    $region50: #{sdne_forward.1} parent=1 // pred_check
      _
    $region51: #{sdne_forward.1} parent=1 // pred_check_branch
      %837 = sbr.rel (0) target = $region53
    $region52: #{sdne_forward.1} parent=1 // pred_region
      _
    $region53: #{sdne_forward.1} parent=1 // pred_fallthru
      _
    %838 = vsyncpa [#allocation3], 1

</llo_original>
